<compile_context>
chip_gen: v6e
topology: v6e:2x2x1
jax: 0.10.0
libtpu: 0.0.40
codegen_flags: <defaults>
</compile_context>

<pallas_src>
import jax
import jax.numpy as jnp
from jax.experimental import pallas as pl
from jax.experimental.pallas import tpu as pltpu

LANE = 128     # TPU vreg lane width
SUBLANE = 8    # f32 sublane count


def _round_up(n, m):
    return ((n + m - 1) // m) * m


def toy_mp_kernel(x_ref, w1_ref, b1_ref, w2_ref, b2_ref, o_ref):
    # x_ref:  (tb, 10)    w1_ref: (10, 128)   b1_ref: (1, 128)
    # w2_ref: (128, 5)    b2_ref: (1, 5)      o_ref:  (tb, 5)
    x = x_ref[...]
    h = jnp.dot(x, w1_ref[...], preferred_element_type=jnp.float32) + b1_ref[...]
    h = jnp.maximum(h, 0.0)  # ReLU on VPU (f32: safe on v5e/v6e/v7x)
    y = jnp.dot(h, w2_ref[...], preferred_element_type=jnp.float32) + b2_ref[...]
    o_ref[...] = y.astype(o_ref.dtype)


def pad_params(w1, b1, w2, b2):
    """Pad the hidden dimension to 128 lanes ONCE, outside the forward.

    w1: (10, 10) -> (10, 128);  b1: (10,) -> (1, 128)
    w2: (10, 5)  -> (128, 5);   b2: (5,)  -> (1, 5)
    Padding is exact: padded hidden columns of h are relu(0 + 0) = 0 and the corresponding
    padded rows of w2 are 0, so they contribute nothing to the second matmul.
    """
    in_f, hid = w1.shape
    hid_p = _round_up(hid, LANE)
    w1p = jnp.pad(w1, ((0, 0), (0, hid_p - hid)))
    b1p = jnp.pad(b1.reshape(1, -1), ((0, 0), (0, hid_p - hid)))
    w2p = jnp.pad(w2, ((0, hid_p - hid), (0, 0)))
    b2p = b2.reshape(1, -1)
    return w1p, b1p, w2p, b2p


def toy_mp_forward(x, w1p, b1p, w2p, b2p, *, batch_tile=2048):
    """x: (B, 10) f32; pre-padded params from pad_params(). Returns (B, 5)."""
    B, in_f = x.shape
    assert w1p.shape[0] == in_f
    hid_p = w1p.shape[1]
    out_f = w2p.shape[1]

    # Sublane-align the batch tile; adapt the tile to small batches to limit wasted rows.
    # (Cap batch_tile ~4096 under v5e's 16 MiB scoped VMEM default; ~8192 is fine on v6e/v7x.)
    tb = _round_up(min(batch_tile, _round_up(B, SUBLANE)), SUBLANE)
    B_pad = _round_up(B, tb)
    if B_pad != B:
        # Only the batch dim is padded (feature dims stay 10/5-wide in HBM).
        x = jnp.pad(x, ((0, B_pad - B), (0, 0)))
    grid = (B_pad // tb,)

    cost = pl.CostEstimate(
        flops=2 * B_pad * (in_f * hid_p + hid_p * out_f),
        transcendentals=0,
        bytes_accessed=4 * (B_pad * (in_f + out_f)
                            + w1p.size + b1p.size + w2p.size + b2p.size),
    )

    out = pl.pallas_call(
        toy_mp_kernel,
        out_shape=jax.ShapeDtypeStruct((B_pad, out_f), x.dtype),
        grid_spec=pl.GridSpec(
            grid=grid,
            in_specs=[
                # x: tiled along batch; last dim == full array dim (10) -> no lane padding in HBM.
                pl.BlockSpec((tb, in_f), lambda i: (i, 0)),
                # Weights/biases: constant index_map -> fetched once, VMEM-resident across tiles.
                pl.BlockSpec((in_f, hid_p), lambda i: (0, 0)),
                pl.BlockSpec((1, hid_p), lambda i: (0, 0)),
                pl.BlockSpec((hid_p, out_f), lambda i: (0, 0)),
                pl.BlockSpec((1, out_f), lambda i: (0, 0)),
            ],
            # Output: (tb, 5) blocks; 5 == full array dim, so only B*5*4 bytes hit HBM.
            out_specs=pl.BlockSpec((tb, out_f), lambda i: (i, 0)),
        ),
        compiler_params=pltpu.CompilerParams(
            # Batch tiles are independent -> shard across TensorCores (matters on v7x's 2 TCs).
            dimension_semantics=("parallel",),
        ),
        cost_estimate=cost,
    )(x, w1p, b1p, w2p, b2p)

    if B_pad != B:
        out = out[:B]
    return out


def init_params(key):
    """Deterministic init mimicking torch.nn.Linear defaults: U(-1/sqrt(fan_in), +1/sqrt(fan_in))."""
    k1, k2, k3, k4 = jax.random.split(key, 4)
    in1, out1 = 10, 10
    in2, out2 = 10, 5
    bound1 = 1.0 / jnp.sqrt(in1)
    bound2 = 1.0 / jnp.sqrt(in2)
    # Stored (in, out) relative to PyTorch's (out, in) so the kernel does x @ W.
    w1 = jax.random.uniform(k1, (in1, out1), jnp.float32, -bound1, bound1)
    b1 = jax.random.uniform(k2, (out1,), jnp.float32, -bound1, bound1)
    w2 = jax.random.uniform(k3, (in2, out2), jnp.float32, -bound2, bound2)
    b2 = jax.random.uniform(k4, (out2,), jnp.float32, -bound2, bound2)
    return w1, b1, w2, b2


def reference_forward(x, w1, b1, w2, b2):
    h = jnp.maximum(x @ w1 + b1[None, :], 0.0)
    return h @ w2 + b2[None, :]


if __name__ == "__main__":
    key = jax.random.PRNGKey(0)
    kx, kp = jax.random.split(key)

    batch = 16  # small demo shape; wrapper tiles/pads the batch internally
    x = jax.random.normal(kx, (batch, 10), jnp.float32)
    w1, b1, w2, b2 = init_params(kp)

    # Pad weights once (hoisted out of the forward per perf review).
    w1p, b1p, w2p, b2p = pad_params(w1, b1, w2, b2)

    out = jax.block_until_ready(toy_mp_forward(x, w1p, b1p, w2p, b2p))

    # Sanity check against plain-JAX reference.
    ref = reference_forward(x, w1, b1, w2, b2)
    assert out.shape == (batch, 5), out.shape
    assert jnp.allclose(out, ref, atol=1e-5, rtol=1e-5), "mismatch vs reference"

    print("KERNEL_OK")
</pallas_src>

<mosaic_0001>
module attributes {stable_mosaic.version = 11 : i64} {
  func.func @toy_mp_kernel(%arg0: i32, %arg1: memref<16x10xf32, #tpu.memory_space<vmem>>, %arg2: memref<10x128xf32, #tpu.memory_space<vmem>>, %arg3: memref<1x128xf32, #tpu.memory_space<vmem>>, %arg4: memref<128x5xf32, #tpu.memory_space<vmem>>, %arg5: memref<1x5xf32, #tpu.memory_space<vmem>>, %arg6: memref<16x5xf32, #tpu.memory_space<vmem>>) attributes {dimension_semantics = [#tpu.dimension_semantics<parallel>], iteration_bounds = array<i64: 1>, scalar_prefetch = 0 : i64, scratch_operands = 0 : i64, tpu.core_type = #tpu.core_type<tc>, window_params = [{transform_indices = @transform_0, window_bounds = array<i64: 16, 10>}, {pipeline_mode = #tpu.pipeline_mode<synchronous>, transform_indices = @transform_1, window_bounds = array<i64: 10, 128>}, {pipeline_mode = #tpu.pipeline_mode<synchronous>, transform_indices = @transform_2, window_bounds = array<i64: 1, 128>}, {pipeline_mode = #tpu.pipeline_mode<synchronous>, transform_indices = @transform_3, window_bounds = array<i64: 128, 5>}, {pipeline_mode = #tpu.pipeline_mode<synchronous>, transform_indices = @transform_4, window_bounds = array<i64: 1, 5>}, {transform_indices = @transform_5, window_bounds = array<i64: 16, 5>}]} {
    %c0 = arith.constant 0 : index
    %c0_0 = arith.constant 0 : index
    %0 = vector.load %arg1[%c0, %c0_0] : memref<16x10xf32, #tpu.memory_space<vmem>>, vector<16x10xf32>
    %c0_1 = arith.constant 0 : index
    %c0_2 = arith.constant 0 : index
    %1 = vector.load %arg2[%c0_1, %c0_2] : memref<10x128xf32, #tpu.memory_space<vmem>>, vector<10x128xf32>
    %cst = arith.constant dense<0.000000e+00> : vector<16x128xf32>
    %2 = tpu.matmul %0, %1, %cst {dimension_numbers = #tpu.dot_dimension_numbers<[1], [0], [0], [1], [0, 0, 1, 1], [], []>} : vector<16x10xf32>, vector<10x128xf32>, vector<16x128xf32> -> vector<16x128xf32>
    %c0_3 = arith.constant 0 : index
    %c0_4 = arith.constant 0 : index
    %3 = vector.load %arg3[%c0_3, %c0_4] : memref<1x128xf32, #tpu.memory_space<vmem>>, vector<1x128xf32>
    %4 = vector.broadcast %3 : vector<1x128xf32> to vector<16x128xf32>
    %5 = arith.addf %2, %4 : vector<16x128xf32>
    %cst_5 = arith.constant 0.000000e+00 : f32
    %6 = vector.broadcast %cst_5 : f32 to vector<16x128xf32>
    %7 = arith.maximumf %5, %6 : vector<16x128xf32>
    %c0_6 = arith.constant 0 : index
    %c0_7 = arith.constant 0 : index
    %8 = vector.load %arg4[%c0_6, %c0_7] : memref<128x5xf32, #tpu.memory_space<vmem>>, vector<128x5xf32>
    %cst_8 = arith.constant dense<0.000000e+00> : vector<16x5xf32>
    %9 = tpu.matmul %7, %8, %cst_8 {dimension_numbers = #tpu.dot_dimension_numbers<[1], [0], [0], [1], [0, 0, 1, 1], [], []>} : vector<16x128xf32>, vector<128x5xf32>, vector<16x5xf32> -> vector<16x5xf32>
    %c0_9 = arith.constant 0 : index
    %c0_10 = arith.constant 0 : index
    %10 = vector.load %arg5[%c0_9, %c0_10] : memref<1x5xf32, #tpu.memory_space<vmem>>, vector<1x5xf32>
    %11 = vector.broadcast %10 : vector<1x5xf32> to vector<16x5xf32>
    %12 = arith.addf %9, %11 : vector<16x5xf32>
    %c0_11 = arith.constant 0 : index
    %c0_12 = arith.constant 0 : index
    %13 = vector.load %arg6[%c0_11, %c0_12] : memref<16x5xf32, #tpu.memory_space<vmem>>, vector<16x5xf32>
    tpu.vector_store %arg6[%c0_11, %c0_12], %12 {strides = array<i32>} : memref<16x5xf32, #tpu.memory_space<vmem>>, vector<16x5xf32>,
    return
  }
  func.func @transform_0(%arg0: i32) -> (i32, i32) {
    %c0_i32 = arith.constant 0 : i32
    %c0_i32_0 = arith.constant 0 : i32
    return %arg0, %c0_i32 : i32, i32
  }
  func.func @transform_1(%arg0: i32) -> (i32, i32) {
    %c0_i32 = arith.constant 0 : i32
    %c0_i32_0 = arith.constant 0 : i32
    %c0_i32_1 = arith.constant 0 : i32
    return %c0_i32, %c0_i32_0 : i32, i32
  }
  func.func @transform_2(%arg0: i32) -> (i32, i32) {
    %c0_i32 = arith.constant 0 : i32
    %c0_i32_0 = arith.constant 0 : i32
    %c0_i32_1 = arith.constant 0 : i32
    return %c0_i32, %c0_i32_0 : i32, i32
  }
  func.func @transform_3(%arg0: i32) -> (i32, i32) {
    %c0_i32 = arith.constant 0 : i32
    %c0_i32_0 = arith.constant 0 : i32
    %c0_i32_1 = arith.constant 0 : i32
    return %c0_i32, %c0_i32_0 : i32, i32
  }
  func.func @transform_4(%arg0: i32) -> (i32, i32) {
    %c0_i32 = arith.constant 0 : i32
    %c0_i32_0 = arith.constant 0 : i32
    %c0_i32_1 = arith.constant 0 : i32
    return %c0_i32, %c0_i32_0 : i32, i32
  }
  func.func @transform_5(%arg0: i32) -> (i32, i32) {
    %c0_i32 = arith.constant 0 : i32
    %c0_i32_0 = arith.constant 0 : i32
    return %arg0, %c0_i32 : i32, i32
  }
}

</mosaic_0001>

<llo_original>
// kernel: tpu_custom_call.1
$region0: #{tpu_custom_call.1}
  #allocation0 [shape = 'u32[]', space=smem, size = 0x4, offset = 0x4, fixed_abs, tag = 'smem constant byte address 0x4 - core index']
  #allocation1 [shape = 'u32[144,128]{1,0:T(1,128)}', space=vmem, size = 0x12000, scoped, tag = 'internal scratch']
  %s0 = inlined_call_operand.vmem [shape: f32[16,10], index: 0, kind: input, shape index: {}]
  %s1 = inlined_call_operand.vmem [shape: f32[10,128], index: 1, kind: input, shape index: {}]
  %s2 = inlined_call_operand.vmem [shape: f32[1,128], index: 2, kind: input, shape index: {}]
  %s3 = inlined_call_operand.vmem [shape: f32[128,5], index: 3, kind: input, shape index: {}]
  %s4 = inlined_call_operand.vmem [shape: f32[1,5], index: 4, kind: input, shape index: {}]
  %s5 = inlined_call_operand.vmem [shape: f32[16,5], index: 5, kind: output, shape index: {}]
  %s6 = sld [smem:[#allocation0]]
  $region30: #{tpu_custom_call.1} parent=0
    _
  %s8 = ssub.s32 1, %s6
  %s9 = scalar_select 0, %s8, %s6
  // Predicated region
  $region2: #{tpu_custom_call.1} parent=0 // pred_check
    _
  $region3: #{tpu_custom_call.1} parent=0 // pred_check_branch
    %11 = sbr.rel (0) target = $region5
  $region4: #{tpu_custom_call.1} parent=0 // pred_region
    _
  $region5: #{tpu_custom_call.1} parent=0 // pred_fallthru
    _
  // Predicated region
  $region6: #{tpu_custom_call.1} parent=0 // pred_check
    _
  $region7: #{tpu_custom_call.1} parent=0 // pred_check_branch
    %13 = sbr.rel (0) target = $region9
  $region8: #{tpu_custom_call.1} parent=0 // pred_region
    _
  $region9: #{tpu_custom_call.1} parent=0 // pred_fallthru
    _
  // Predicated region
  $region10: #{tpu_custom_call.1} parent=0 // pred_check
    _
  $region11: #{tpu_custom_call.1} parent=0 // pred_check_branch
    %15 = sbr.rel (0) target = $region13
  $region12: #{tpu_custom_call.1} parent=0 // pred_region
    _
  $region13: #{tpu_custom_call.1} parent=0 // pred_fallthru
    _
  // Predicated region
  $region14: #{tpu_custom_call.1} parent=0 // pred_check
    _
  $region15: #{tpu_custom_call.1} parent=0 // pred_check_branch
    %17 = sbr.rel (0) target = $region17
  $region16: #{tpu_custom_call.1} parent=0 // pred_region
    _
  $region17: #{tpu_custom_call.1} parent=0 // pred_fallthru
    _
  // Predicated region
  $region18: #{tpu_custom_call.1} parent=0 // pred_check
    _
  $region19: #{tpu_custom_call.1} parent=0 // pred_check_branch
    %19 = sbr.rel (0) target = $region21
  $region20: #{tpu_custom_call.1} parent=0 // pred_region
    _
  $region21: #{tpu_custom_call.1} parent=0 // pred_fallthru
    _
  %v20 = vld [vmem:[%s0] sm:$0xff]
  %v21 = vld [vmem:[%s0 + $0x8] sm:$0xff]
  %v22 = vld [vmem:[%s1] sm:$0xff]
  %v23 = vld [vmem:[%s1 + $0x8] sm:$0x3]
  %v24 = vld [vmem:[%s2] sm:$0x1]
  %v26 = vlaneseq
  %v27 = vshrl.u32 %v26, 7
  %v28 = vsub.s32 0, %v27
  %v29 = vrot.slane %v24, %v28
  %vm31 = vcmask 80896
  %v33 = vsel %vm31, %v20, 0
  %v36 = vsel %vm31, %v21, 0
  %vm38 = vcmask 1041408
  %v40 = vsel %vm38, %v23, 0
  %42 = vmatprep.subr.mxu0 0.0
  %43 = vmatpush1.msra.mxu0 0.0
  %44 = vmatprep.subr.mxu0 0.0
  %45 = vmatpush1.msra.mxu0 0.0
  %46 = vmatprep.subr.mxu0 0.0
  %47 = vmatpush1.msra.mxu0 0.0
  %48 = vmatprep.subr.mxu0 0.0
  %49 = vmatpush1.msra.mxu0 0.0
  %50 = vmatprep.subr.mxu0 0.0
  %51 = vmatpush1.msra.mxu0 0.0
  %52 = vmatprep.subr.mxu0 0.0
  %53 = vmatpush1.msra.mxu0 0.0
  %54 = vmatprep.subr.mxu0 0.0
  %55 = vmatpush1.msra.mxu0 0.0
  %56 = vmatprep.subr.mxu0 0.0
  %57 = vmatpush1.msra.mxu0 0.0
  %58 = vmatprep.subr.mxu0 0.0
  %59 = vmatpush1.msra.mxu0 0.0
  %60 = vmatprep.subr.mxu0 0.0
  %61 = vmatpush1.msra.mxu0 0.0
  %62 = vmatprep.subr.mxu0 0.0
  %63 = vmatpush1.msra.mxu0 0.0
  %64 = vmatprep.subr.mxu0 0.0
  %65 = vmatpush1.msra.mxu0 0.0
  %66 = vmatprep.subr.mxu0 0.0
  %67 = vmatpush1.msra.mxu0 0.0
  %68 = vmatprep.subr.mxu0 0.0
  %69 = vmatpush1.msra.mxu0 0.0
  %70 = vmatprep.subr.mxu0 0.0
  %71 = vmatpush1.msra.mxu0 %v40
  %72 = vmatprep.subr.mxu0 0.0
  %73 = vmatpush1.msra.mxu0 %v22
  %74 = vmatprep.subr.mxu0 0.0
  %75 = vmatpush2.msra.mxu0 0.0
  %76 = vmatprep.subr.mxu0 0.0
  %77 = vmatpush2.msra.mxu0 0.0
  %78 = vmatprep.subr.mxu0 0.0
  %79 = vmatpush2.msra.mxu0 0.0
  %80 = vmatprep.subr.mxu0 0.0
  %81 = vmatpush2.msra.mxu0 0.0
  %82 = vmatprep.subr.mxu0 0.0
  %83 = vmatpush2.msra.mxu0 0.0
  %84 = vmatprep.subr.mxu0 0.0
  %85 = vmatpush2.msra.mxu0 0.0
  %86 = vmatprep.subr.mxu0 0.0
  %87 = vmatpush2.msra.mxu0 0.0
  %88 = vmatprep.subr.mxu0 0.0
  %89 = vmatpush2.msra.mxu0 0.0
  %90 = vmatprep.subr.mxu0 0.0
  %91 = vmatpush2.msra.mxu0 0.0
  %92 = vmatprep.subr.mxu0 0.0
  %93 = vmatpush2.msra.mxu0 0.0
  %94 = vmatprep.subr.mxu0 0.0
  %95 = vmatpush2.msra.mxu0 0.0
  %96 = vmatprep.subr.mxu0 0.0
  %97 = vmatpush2.msra.mxu0 0.0
  %98 = vmatprep.subr.mxu0 0.0
  %99 = vmatpush2.msra.mxu0 0.0
  %100 = vmatprep.subr.mxu0 0.0
  %101 = vmatpush2.msra.mxu0 0.0
  %102 = vmatprep.subr.mxu0 0.0
  %103 = vmatpush2.msra.mxu0 0.0
  %104 = vmatprep.subr.mxu0 0.0
  %105 = vmatpush2.msra.mxu0 0.0
  %106 = vmatprep.mubr.f32.mxu0 0.0
  %107 = vmatmul.mubr.f32.gmra.mxu0 %v33
  %v108 = vpop.f32.mrf.mxu0
  %v109 = vadd.f32 %v29, %v108
  %v110 = vpop.f32.mrf.mxu0
  %111 = vmatprep.mubr.f32.mxu0 0.0
  %112 = vmatmul.mubr.f32.gmra.mxu0 %v36
  %v113 = vpop.f32.mrf.mxu0
  %v114 = vadd.f32 %v29, %v113
  %v115 = vpop.f32.mrf.mxu0
  %116 = vdwg.mxu0
  %v117 = vmax.f32 %v109, 0.0
  %v118 = vmax.f32 %v114, 0.0
  %v119 = vld [vmem:[%s3] sm:$0xff]
  %v120 = vld [vmem:[%s3 + $0x8] sm:$0xff]
  %v121 = vld [vmem:[%s3 + $0x10] sm:$0xff]
  %v122 = vld [vmem:[%s3 + $0x18] sm:$0xff]
  %v123 = vld [vmem:[%s3 + $0x20] sm:$0xff]
  %v124 = vld [vmem:[%s3 + $0x28] sm:$0xff]
  %v125 = vld [vmem:[%s3 + $0x30] sm:$0xff]
  %v126 = vld [vmem:[%s3 + $0x38] sm:$0xff]
  %v127 = vld [vmem:[%s3 + $0x40] sm:$0xff]
  %v128 = vld [vmem:[%s3 + $0x48] sm:$0xff]
  %v129 = vld [vmem:[%s3 + $0x50] sm:$0xff]
  %v130 = vld [vmem:[%s3 + $0x58] sm:$0xff]
  %v131 = vld [vmem:[%s3 + $0x60] sm:$0xff]
  %v132 = vld [vmem:[%s3 + $0x68] sm:$0xff]
  %v133 = vld [vmem:[%s3 + $0x70] sm:$0xff]
  %v134 = vld [vmem:[%s3 + $0x78] sm:$0xff]
  %v135 = vld [vmem:[%s4] sm:$0x1]
  %v137 = vlaneseq
  %v138 = vshrl.u32 %v137, 7
  %v139 = vsub.s32 0, %v138
  %v140 = vrot.slane %v135, %v139
  %142 = vmatprep.subr.mxu0 0.0
  %143 = vmatpush1.msra.mxu0 %v134
  %144 = vmatprep.subr.mxu0 0.0
  %145 = vmatpush1.msra.mxu0 %v133
  %146 = vmatprep.subr.mxu0 0.0
  %147 = vmatpush1.msra.mxu0 %v132
  %148 = vmatprep.subr.mxu0 0.0
  %149 = vmatpush1.msra.mxu0 %v131
  %150 = vmatprep.subr.mxu0 0.0
  %151 = vmatpush1.msra.mxu0 %v130
  %152 = vmatprep.subr.mxu0 0.0
  %153 = vmatpush1.msra.mxu0 %v129
  %154 = vmatprep.subr.mxu0 0.0
  %155 = vmatpush1.msra.mxu0 %v128
  %156 = vmatprep.subr.mxu0 0.0
  %157 = vmatpush1.msra.mxu0 %v127
  %158 = vmatprep.subr.mxu0 0.0
  %159 = vmatpush1.msra.mxu0 %v126
  %160 = vmatprep.subr.mxu0 0.0
  %161 = vmatpush1.msra.mxu0 %v125
  %162 = vmatprep.subr.mxu0 0.0
  %163 = vmatpush1.msra.mxu0 %v124
  %164 = vmatprep.subr.mxu0 0.0
  %165 = vmatpush1.msra.mxu0 %v123
  %166 = vmatprep.subr.mxu0 0.0
  %167 = vmatpush1.msra.mxu0 %v122
  %168 = vmatprep.subr.mxu0 0.0
  %169 = vmatpush1.msra.mxu0 %v121
  %170 = vmatprep.subr.mxu0 0.0
  %171 = vmatpush1.msra.mxu0 %v120
  %172 = vmatprep.subr.mxu0 0.0
  %173 = vmatpush1.msra.mxu0 %v119
  %174 = vmatprep.subr.mxu0 0.0
  %175 = vmatpush2.msra.mxu0 0.0
  %176 = vmatprep.subr.mxu0 0.0
  %177 = vmatpush2.msra.mxu0 0.0
  %178 = vmatprep.subr.mxu0 0.0
  %179 = vmatpush2.msra.mxu0 0.0
  %180 = vmatprep.subr.mxu0 0.0
  %181 = vmatpush2.msra.mxu0 0.0
  %182 = vmatprep.subr.mxu0 0.0
  %183 = vmatpush2.msra.mxu0 0.0
  %184 = vmatprep.subr.mxu0 0.0
  %185 = vmatpush2.msra.mxu0 0.0
  %186 = vmatprep.subr.mxu0 0.0
  %187 = vmatpush2.msra.mxu0 0.0
  %188 = vmatprep.subr.mxu0 0.0
  %189 = vmatpush2.msra.mxu0 0.0
  %190 = vmatprep.subr.mxu0 0.0
  %191 = vmatpush2.msra.mxu0 0.0
  %192 = vmatprep.subr.mxu0 0.0
  %193 = vmatpush2.msra.mxu0 0.0
  %194 = vmatprep.subr.mxu0 0.0
  %195 = vmatpush2.msra.mxu0 0.0
  %196 = vmatprep.subr.mxu0 0.0
  %197 = vmatpush2.msra.mxu0 0.0
  %198 = vmatprep.subr.mxu0 0.0
  %199 = vmatpush2.msra.mxu0 0.0
  %200 = vmatprep.subr.mxu0 0.0
  %201 = vmatpush2.msra.mxu0 0.0
  %202 = vmatprep.subr.mxu0 0.0
  %203 = vmatpush2.msra.mxu0 0.0
  %204 = vmatprep.subr.mxu0 0.0
  %205 = vmatpush2.msra.mxu0 0.0
  %206 = vmatprep.mubr.f32.mxu0 0.0
  %207 = vmatmul.mubr.f32.gmra.mxu0 %v117
  %v208 = vpop.f32.mrf.mxu0
  %v209 = vadd.f32 %v140, %v208
  %v210 = vpop.f32.mrf.mxu0
  %211 = vmatprep.mubr.f32.mxu0 0.0
  %212 = vmatmul.mubr.f32.gmra.mxu0 %v118
  %v213 = vpop.f32.mrf.mxu0
  %v214 = vadd.f32 %v140, %v213
  %v215 = vpop.f32.mrf.mxu0
  %216 = vdwg.mxu0
  %vm217 = vcmask 39936
  %218 = vst.msk [vmem:[%s5] sm:$0xff] %vm217, %v209
  %219 = vst.msk [vmem:[%s5 + $0x8] sm:$0xff] %vm217, %v214
  // Predicated region
  $region22: #{tpu_custom_call.1} parent=0 // pred_check
    _
  $region23: #{tpu_custom_call.1} parent=0 // pred_check_branch
    %221 = sbr.rel (0) target = $region25
  $region24: #{tpu_custom_call.1} parent=0 // pred_region
    _
  $region25: #{tpu_custom_call.1} parent=0 // pred_fallthru
    _
  // Predicated region
  $region26: #{tpu_custom_call.1} parent=0 // pred_check
    _
  $region27: #{tpu_custom_call.1} parent=0 // pred_check_branch
    %223 = sbr.rel (0) target = $region29
  $region28: #{tpu_custom_call.1} parent=0 // pred_region
    _
  $region29: #{tpu_custom_call.1} parent=0 // pred_fallthru
    _

</llo_original>
